<compile_context>
chip_gen: v7x
topology: tpu7x:2x2x1
jax: 0.10.0
libtpu: 0.0.40
codegen_flags: <defaults>
</compile_context>

<pallas_src>
import functools
import math

import jax
import jax.numpy as jnp
from jax.experimental import pallas as pl
from jax.experimental.pallas import tpu as pltpu


def _round_up(v, m):
    return -(-v // m) * m


def _pick_divisor_tile(dim, max_tile, align):
    """Largest multiple of `align` that divides `dim` and is <= max_tile, else None."""
    if dim % align != 0:
        return None
    best = None
    t = align
    top = min(max_tile, dim)
    while t <= top:
        if dim % t == 0:
            best = t
        t += align
    return best


def _glu_linear_kernel(x_ref, wl_ref, wr_ref, bl_ref, br_ref, o_ref,
                       acc_l_ref, acc_r_ref, *, mxu_dtype, approx_gate):
    k = pl.program_id(2)

    @pl.when(k == 0)
    def _init():
        # Fold the bias into the accumulator init: removes two (tm, tn) VPU
        # adds and the redundant zero-store from the serialized epilogue.
        acc_l_ref[...] = jnp.broadcast_to(
            bl_ref[...].astype(jnp.float32), acc_l_ref.shape)
        acc_r_ref[...] = jnp.broadcast_to(
            br_ref[...].astype(jnp.float32), acc_r_ref.shape)

    x = x_ref[...]
    wl = wl_ref[...]
    wr = wr_ref[...]
    if mxu_dtype is not None:
        # Feed the MXU bf16 (f32 matmul is heavily de-rated on all gens);
        # accumulation stays f32 via preferred_element_type.
        if x.dtype != mxu_dtype:
            x = x.astype(mxu_dtype)
        if wl.dtype != mxu_dtype:
            wl = wl.astype(mxu_dtype)
        if wr.dtype != mxu_dtype:
            wr = wr.astype(mxu_dtype)
    acc_l_ref[...] += jnp.dot(x, wl, preferred_element_type=jnp.float32)
    acc_r_ref[...] += jnp.dot(x, wr, preferred_element_type=jnp.float32)

    @pl.when(k == pl.num_programs(2) - 1)
    def _finalize():
        lhs = acc_l_ref[...]
        rhs = acc_r_ref[...]
        if approx_gate:
            # sigmoid(rhs) = 1 / (1 + exp(-rhs)): exp + approximate reciprocal
            # run on the EUP slot, the multiply on the VPU — off MXU/ld-st.
            gate = pl.reciprocal(1.0 + jnp.exp(-rhs), approx=True)
        else:
            gate = 1.0 / (1.0 + jnp.exp(-rhs))      # exact sigmoid
        o_ref[...] = (lhs * gate).astype(o_ref.dtype)


def glu_forward(x, weight, bias=None, *, mxu_dtype=jnp.bfloat16, approx_gate=True):
    """Fused linear + GLU: out = lhs * sigmoid(rhs) with [lhs|rhs] = x @ W + b.

    x:          (..., d_model1)
    weight:     (d_model1, 2*d_model2)   (transposed vs. torch nn.Linear storage)
    bias:       (2*d_model2,) or None
    mxu_dtype:  dtype the matmul operands are cast to in-kernel (None = no cast,
                full-precision matmul).
    approx_gate: use the EUP approximate reciprocal inside the sigmoid.
    returns (..., d_model2)
    """
    *lead, K = x.shape
    Kw, two_n = weight.shape
    assert Kw == K and two_n % 2 == 0
    N = two_n // 2
    M = math.prod(lead) if lead else 1
    out_dtype = x.dtype
    if mxu_dtype is not None:
        mxu_dtype = jnp.dtype(mxu_dtype)
    x2 = x.reshape(M, K)

    # ---- tile selection ------------------------------------------------------
    # Sublane quantum is dtype-aware (8 for 4-byte, 16 for 2-byte, 32 for 1-byte).
    sublane = {4: 8, 2: 16, 1: 32}.get(jnp.dtype(x.dtype).itemsize, 8)

    # M: for large M use tm=512 and let Pallas handle the ragged edge (garbage
    # rows only produce output rows that are sliced off — no cross-row mixing).
    # For small M pad at most a few rows (negligible copy).
    if M > 512:
        tm, Mp = 512, M
    else:
        tm = _round_up(M, sublane)
        Mp = tm

    # K (contraction) must be covered exactly.  Prefer a lane-aligned divisor
    # tile (no padding), else a single full-K tile, else pad as a last resort.
    tk = _pick_divisor_tile(K, 1024, 128)
    if tk is not None:
        Kp = K
    elif K <= 2048:
        tk, Kp = K, K
    else:
        tk = 512
        Kp = _round_up(K, tk)

    # N (each GLU half): the rhs half must start on a tn block boundary so the
    # split stays pure index_map plumbing.  A divisor tile avoids any
    # wrapper-side repack of the weight (extra HBM pass) on the fast path.
    tn = _pick_divisor_tile(N, 512, 128)
    n_repack = tn is None
    if n_repack:
        tn = min(512, _round_up(N, 128))
        Np = _round_up(N, tn)
    else:
        Np = N

    # ---- input staging (no HBM repack on the aligned fast path) --------------
    x_p = x2
    if Mp > M or Kp > K:
        x_p = jnp.pad(x2, ((0, Mp - M), (0, Kp - K)))

    if not n_repack:
        w_p = weight if Kp == K else jnp.pad(weight, ((0, Kp - K), (0, 0)))
        b_p = (jnp.zeros((1, 2 * Np), jnp.float32) if bias is None
               else bias.reshape(1, 2 * N))
    else:
        # Ragged N (d_model2 not a multiple of 128): pad each half to Np and
        # re-concatenate so both halves stay block-aligned.
        w_l = jnp.pad(weight[:, :N], ((0, Kp - K), (0, Np - N)))
        w_r = jnp.pad(weight[:, N:], ((0, Kp - K), (0, Np - N)))
        w_p = jnp.concatenate([w_l, w_r], axis=-1)
        if bias is None:
            b_p = jnp.zeros((1, 2 * Np), jnp.float32)
        else:
            b2 = bias.reshape(1, 2 * N)
            b_l = jnp.pad(b2[:, :N], ((0, 0), (0, Np - N)))
            b_r = jnp.pad(b2[:, N:], ((0, 0), (0, Np - N)))
            b_p = jnp.concatenate([b_l, b_r], axis=-1)

    n_half_blk = Np // tn
    grid = (pl.cdiv(Mp, tm), Np // tn, Kp // tk)

    # ---- VMEM budget: explicit limit, capped for v7x (64 MiB physical) -------
    isz_x = jnp.dtype(x.dtype).itemsize
    isz_w = jnp.dtype(weight.dtype).itemsize
    isz_o = jnp.dtype(out_dtype).itemsize
    vmem_bytes = (2 * tm * tk * isz_x            # x, double-buffered
                  + 2 * 2 * tk * tn * isz_w      # two weight views, double-buffered
                  + 2 * 2 * tn * 4               # bias views (tiny)
                  + 2 * tm * tn * isz_o          # output, double-buffered
                  + 2 * tm * tn * 4)             # f32 accumulators
    vmem_limit = int(min(max(2 * vmem_bytes, 16 << 20), 48 << 20))

    kernel = functools.partial(_glu_linear_kernel,
                               mxu_dtype=mxu_dtype, approx_gate=approx_gate)

    out = pl.pallas_call(
        kernel,
        out_shape=jax.ShapeDtypeStruct((Mp, Np), out_dtype),
        grid_spec=pltpu.PrefetchScalarGridSpec(
            num_scalar_prefetch=0,
            grid=grid,
            in_specs=[
                pl.BlockSpec((tm, tk), lambda i, j, k: (i, k)),
                # Two views of the SAME weight array: lhs half and rhs half.
                pl.BlockSpec((tk, tn), lambda i, j, k: (k, j)),
                pl.BlockSpec((tk, tn), lambda i, j, k: (k, j + n_half_blk)),
                # Same trick for the bias.
                pl.BlockSpec((1, tn), lambda i, j, k: (0, j)),
                pl.BlockSpec((1, tn), lambda i, j, k: (0, j + n_half_blk)),
            ],
            out_specs=pl.BlockSpec((tm, tn), lambda i, j, k: (i, j)),
            scratch_shapes=[
                pltpu.VMEM((tm, tn), jnp.float32),
                pltpu.VMEM((tm, tn), jnp.float32),
            ],
        ),
        compiler_params=pltpu.CompilerParams(
            dimension_semantics=("parallel", "parallel", "arbitrary"),
            vmem_limit_bytes=vmem_limit),
    )(x_p, w_p, w_p, b_p, b_p)

    out = out[:M, :N]
    return out.reshape(*lead, N) if lead else out.reshape(N)


if __name__ == "__main__":
    key = jax.random.PRNGKey(0)
    batch, seq, d_model1, d_model2 = 2, 8, 32, 32
    kx, kw, kb = jax.random.split(key, 3)

    # Deterministic init mirroring torch nn.Linear defaults (bound = 1/sqrt(fan_in)).
    bound = 1.0 / math.sqrt(d_model1)
    weight = jax.random.uniform(kw, (d_model1, 2 * d_model2), jnp.float32,
                                minval=-bound, maxval=bound)
    bias = jax.random.uniform(kb, (2 * d_model2,), jnp.float32,
                              minval=-bound, maxval=bound)
    x = jax.random.normal(kx, (batch, seq, d_model1), jnp.float32)

    hi = jax.lax.Precision.HIGHEST
    y = jnp.einsum("bsk,kn->bsn", x, weight, precision=hi) + bias
    ref = y[..., :d_model2] * jax.nn.sigmoid(y[..., d_model2:])

    # Default fast path: bf16 MXU operands + EUP-approx sigmoid.
    out = glu_forward(x, weight, bias)
    jax.block_until_ready(out)
    assert out.shape == (batch, seq, d_model2)
    assert jnp.allclose(out, ref, atol=2e-2, rtol=2e-2), \
        float(jnp.max(jnp.abs(out - ref)))

    # Exact path (f32 MXU, exact sigmoid) behind flags.
    out_exact = glu_forward(x, weight, bias, mxu_dtype=None, approx_gate=False)
    jax.block_until_ready(out_exact)
    assert jnp.allclose(out_exact, ref, atol=1e-2, rtol=1e-2), \
        float(jnp.max(jnp.abs(out_exact - ref)))

    # bias=False path.
    out_nb = glu_forward(x, weight, None)
    jax.block_until_ready(out_nb)
    y_nb = jnp.einsum("bsk,kn->bsn", x, weight, precision=hi)
    ref_nb = y_nb[..., :d_model2] * jax.nn.sigmoid(y_nb[..., d_model2:])
    assert jnp.allclose(out_nb, ref_nb, atol=2e-2, rtol=2e-2)

    # Lane-aligned shape exercising the no-repack divisor-tile fast path.
    d1a, d2a = 256, 128
    ba = 1.0 / math.sqrt(d1a)
    wa = jax.random.uniform(kw, (d1a, 2 * d2a), jnp.float32, minval=-ba, maxval=ba)
    xa = jax.random.normal(kx, (batch, seq, d1a), jnp.float32)
    out_a = glu_forward(xa, wa, None)
    jax.block_until_ready(out_a)
    ya = jnp.einsum("bsk,kn->bsn", xa, wa, precision=hi)
    ref_a = ya[..., :d2a] * jax.nn.sigmoid(ya[..., d2a:])
    assert jnp.allclose(out_a, ref_a, atol=2e-2, rtol=2e-2)

    print("KERNEL_OK")
</pallas_src>

<mosaic_0001>
module attributes {stable_mosaic.version = 11 : i64} {
  func.func @_glu_linear_kernel(%arg0: i32, %arg1: i32, %arg2: i32, %arg3: memref<16x32xf32, #tpu.memory_space<vmem>>, %arg4: memref<32x128xf32, #tpu.memory_space<vmem>>, %arg5: memref<32x128xf32, #tpu.memory_space<vmem>>, %arg6: memref<1x128xf32, #tpu.memory_space<vmem>>, %arg7: memref<1x128xf32, #tpu.memory_space<vmem>>, %arg8: memref<16x128xf32, #tpu.memory_space<vmem>>, %arg9: memref<16x128xf32, #tpu.memory_space<vmem>>, %arg10: memref<16x128xf32, #tpu.memory_space<vmem>>) attributes {dimension_semantics = [#tpu.dimension_semantics<parallel>, #tpu.dimension_semantics<parallel>, #tpu.dimension_semantics<arbitrary>], iteration_bounds = array<i64: 1, 1, 1>, scalar_prefetch = 0 : i64, scratch_operands = 2 : i64, tpu.core_type = #tpu.core_type<tc>, window_params = [{transform_indices = @transform_0, window_bounds = array<i64: 16, 32>}, {transform_indices = @transform_1, window_bounds = array<i64: 32, 128>}, {transform_indices = @transform_2, window_bounds = array<i64: 32, 128>}, {transform_indices = @transform_3, window_bounds = array<i64: 1, 128>}, {transform_indices = @transform_4, window_bounds = array<i64: 1, 128>}, {transform_indices = @transform_5, window_bounds = array<i64: 16, 128>}]} {
    %c0_i32 = arith.constant 0 : i32
    %0 = arith.cmpi eq, %arg2, %c0_i32 : i32
    %1 = arith.extui %0 : i1 to i32
    %c0_i32_0 = arith.constant 0 : i32
    %2 = arith.cmpi ne, %1, %c0_i32_0 : i32
    scf.if %2 {
      %c0_17 = arith.constant 0 : index
      %c0_18 = arith.constant 0 : index
      %20 = vector.load %arg6[%c0_17, %c0_18] : memref<1x128xf32, #tpu.memory_space<vmem>>, vector<1x128xf32>
      %21 = vector.shape_cast %20 : vector<1x128xf32> to vector<1x128xf32>
      %22 = vector.broadcast %21 : vector<1x128xf32> to vector<16x128xf32>
      %c0_19 = arith.constant 0 : index
      %c0_20 = arith.constant 0 : index
      %23 = vector.load %arg9[%c0_19, %c0_20] : memref<16x128xf32, #tpu.memory_space<vmem>>, vector<16x128xf32>
      tpu.vector_store %arg9[%c0_19, %c0_20], %22 {strides = array<i32>} : memref<16x128xf32, #tpu.memory_space<vmem>>, vector<16x128xf32>,
      %c0_21 = arith.constant 0 : index
      %c0_22 = arith.constant 0 : index
      %24 = vector.load %arg7[%c0_21, %c0_22] : memref<1x128xf32, #tpu.memory_space<vmem>>, vector<1x128xf32>
      %25 = vector.shape_cast %24 : vector<1x128xf32> to vector<1x128xf32>
      %26 = vector.broadcast %25 : vector<1x128xf32> to vector<16x128xf32>
      %c0_23 = arith.constant 0 : index
      %c0_24 = arith.constant 0 : index
      %27 = vector.load %arg10[%c0_23, %c0_24] : memref<16x128xf32, #tpu.memory_space<vmem>>, vector<16x128xf32>
      tpu.vector_store %arg10[%c0_23, %c0_24], %26 {strides = array<i32>} : memref<16x128xf32, #tpu.memory_space<vmem>>, vector<16x128xf32>,
    } else {
    }
    %c0 = arith.constant 0 : index
    %c0_1 = arith.constant 0 : index
    %3 = vector.load %arg3[%c0, %c0_1] : memref<16x32xf32, #tpu.memory_space<vmem>>, vector<16x32xf32>
    %c0_2 = arith.constant 0 : index
    %c0_3 = arith.constant 0 : index
    %4 = vector.load %arg4[%c0_2, %c0_3] : memref<32x128xf32, #tpu.memory_space<vmem>>, vector<32x128xf32>
    %c0_4 = arith.constant 0 : index
    %c0_5 = arith.constant 0 : index
    %5 = vector.load %arg5[%c0_4, %c0_5] : memref<32x128xf32, #tpu.memory_space<vmem>>, vector<32x128xf32>
    %6 = arith.truncf %3 : vector<16x32xf32> to vector<16x32xbf16>
    %7 = arith.truncf %4 : vector<32x128xf32> to vector<32x128xbf16>
    %8 = arith.truncf %5 : vector<32x128xf32> to vector<32x128xbf16>
    %c0_6 = arith.constant 0 : index
    %c0_7 = arith.constant 0 : index
    %9 = vector.load %arg9[%c0_6, %c0_7] : memref<16x128xf32, #tpu.memory_space<vmem>>, vector<16x128xf32>
    %cst = arith.constant dense<0.000000e+00> : vector<16x128xf32>
    %10 = tpu.matmul %6, %7, %cst {dimension_numbers = #tpu.dot_dimension_numbers<[1], [0], [0], [1], [0, 0, 1, 1], [], []>} : vector<16x32xbf16>, vector<32x128xbf16>, vector<16x128xf32> -> vector<16x128xf32>
    %11 = arith.addf %9, %10 : vector<16x128xf32>
    %c0_8 = arith.constant 0 : index
    %c0_9 = arith.constant 0 : index
    %12 = vector.load %arg9[%c0_8, %c0_9] : memref<16x128xf32, #tpu.memory_space<vmem>>, vector<16x128xf32>
    tpu.vector_store %arg9[%c0_8, %c0_9], %11 {strides = array<i32>} : memref<16x128xf32, #tpu.memory_space<vmem>>, vector<16x128xf32>,
    %c0_10 = arith.constant 0 : index
    %c0_11 = arith.constant 0 : index
    %13 = vector.load %arg10[%c0_10, %c0_11] : memref<16x128xf32, #tpu.memory_space<vmem>>, vector<16x128xf32>
    %cst_12 = arith.constant dense<0.000000e+00> : vector<16x128xf32>
    %14 = tpu.matmul %6, %8, %cst_12 {dimension_numbers = #tpu.dot_dimension_numbers<[1], [0], [0], [1], [0, 0, 1, 1], [], []>} : vector<16x32xbf16>, vector<32x128xbf16>, vector<16x128xf32> -> vector<16x128xf32>
    %15 = arith.addf %13, %14 : vector<16x128xf32>
    %c0_13 = arith.constant 0 : index
    %c0_14 = arith.constant 0 : index
    %16 = vector.load %arg10[%c0_13, %c0_14] : memref<16x128xf32, #tpu.memory_space<vmem>>, vector<16x128xf32>
    tpu.vector_store %arg10[%c0_13, %c0_14], %15 {strides = array<i32>} : memref<16x128xf32, #tpu.memory_space<vmem>>, vector<16x128xf32>,
    %c0_i32_15 = arith.constant 0 : i32
    %17 = arith.cmpi eq, %arg2, %c0_i32_15 : i32
    %18 = arith.extui %17 : i1 to i32
    %c0_i32_16 = arith.constant 0 : i32
    %19 = arith.cmpi ne, %18, %c0_i32_16 : i32
    scf.if %19 {
      %c0_17 = arith.constant 0 : index
      %c0_18 = arith.constant 0 : index
      %20 = vector.load %arg9[%c0_17, %c0_18] : memref<16x128xf32, #tpu.memory_space<vmem>>, vector<16x128xf32>
      %c0_19 = arith.constant 0 : index
      %c0_20 = arith.constant 0 : index
      %21 = vector.load %arg10[%c0_19, %c0_20] : memref<16x128xf32, #tpu.memory_space<vmem>>, vector<16x128xf32>
      %cst_21 = arith.constant 0.000000e+00 : f32
      %22 = vector.broadcast %cst_21 : f32 to vector<16x128xf32>
      %23 = arith.subf %22, %21 : vector<16x128xf32>
      %24 = math.exp %23 : vector<16x128xf32>
      %cst_22 = arith.constant 1.000000e+00 : f32
      %25 = vector.broadcast %cst_22 : f32 to vector<16x128xf32>
      %26 = arith.addf %25, %24 : vector<16x128xf32>
      %27 = tpu.reciprocal %26 {approx = true} : vector<16x128xf32> -> vector<16x128xf32>
      %28 = arith.mulf %20, %27 : vector<16x128xf32>
      %c0_23 = arith.constant 0 : index
      %c0_24 = arith.constant 0 : index
      %29 = vector.load %arg8[%c0_23, %c0_24] : memref<16x128xf32, #tpu.memory_space<vmem>>, vector<16x128xf32>
      tpu.vector_store %arg8[%c0_23, %c0_24], %28 {strides = array<i32>} : memref<16x128xf32, #tpu.memory_space<vmem>>, vector<16x128xf32>,
    } else {
    }
    return
  }
  func.func @transform_0(%arg0: i32, %arg1: i32, %arg2: i32) -> (i32, i32) {
    %c0_i32 = arith.constant 0 : i32
    return %arg0, %arg2 : i32, i32
  }
  func.func @transform_1(%arg0: i32, %arg1: i32, %arg2: i32) -> (i32, i32) {
    %c0_i32 = arith.constant 0 : i32
    return %arg2, %arg1 : i32, i32
  }
  func.func @transform_2(%arg0: i32, %arg1: i32, %arg2: i32) -> (i32, i32) {
    %c1_i32 = arith.constant 1 : i32
    %0 = arith.addi %arg1, %c1_i32 : i32
    %c0_i32 = arith.constant 0 : i32
    return %arg2, %0 : i32, i32
  }
  func.func @transform_3(%arg0: i32, %arg1: i32, %arg2: i32) -> (i32, i32) {
    %c0_i32 = arith.constant 0 : i32
    %c0_i32_0 = arith.constant 0 : i32
    return %c0_i32, %arg1 : i32, i32
  }
  func.func @transform_4(%arg0: i32, %arg1: i32, %arg2: i32) -> (i32, i32) {
    %c1_i32 = arith.constant 1 : i32
    %0 = arith.addi %arg1, %c1_i32 : i32
    %c0_i32 = arith.constant 0 : i32
    %c0_i32_0 = arith.constant 0 : i32
    return %c0_i32, %0 : i32, i32
  }
  func.func @transform_5(%arg0: i32, %arg1: i32, %arg2: i32) -> (i32, i32) {
    %c0_i32 = arith.constant 0 : i32
    return %arg0, %arg1 : i32, i32
  }
}

</mosaic_0001>

<llo_original>
// kernel: tpu_custom_call.1
$region0: #{tpu_custom_call.1}
  #allocation0 [shape = 'u32[]', space=smem, size = 0x4, offset = 0x4, fixed_abs, tag = 'smem constant byte address 0x4 - core index']
  #allocation1 [shape = 'u32[144,128]{1,0:T(1,128)}', space=vmem, size = 0x12000, scoped, tag = 'internal scratch']
  #allocation2 [shape = 'f32[16,128]{1,0:T(8,128)}', space=vmem, size = 0x2000, scoped, tag = 'scratch operand']
  #allocation3 [shape = 'f32[16,128]{1,0:T(8,128)}', space=vmem, size = 0x2000, scoped, tag = 'scratch operand']
  %s0 = inlined_call_operand.hbm [shape: f32[16,32], index: 0, kind: input, shape index: {}]
  %s1 = inlined_call_operand.hbm [shape: f32[32,256], index: 1, kind: input, shape index: {}]
  %s2 = inlined_call_operand.hbm [shape: f32[32,256], index: 2, kind: input, shape index: {}]
  %s3 = inlined_call_operand.vmem [shape: f32[1,256], index: 3, kind: input, shape index: {}]
  %s4 = inlined_call_operand.vmem [shape: f32[1,256], index: 4, kind: input, shape index: {}]
  %s5 = inlined_call_operand.hbm [shape: f32[16,128], index: 5, kind: output, shape index: {}]
  %s6 = sld [smem:[#allocation0]]
  $region50: #{tpu_custom_call.1} parent=0
    _
  %s8 = ssub.s32 1, %s6
  %s9 = scalar_select 0, %s8, %s6
  $region1: #{tpu_custom_call.1} parent=0
    #allocation4 [shape = 'u8[8192]{0}', space=vmem, size = 0x2000, scoped, tag = 'input window, operand 0, single buffered']
    #allocation5 [shape = 's32[1]{0}', space=sflag, size = 0x4, scoped, tag = 'scoped memory for tpu_custom_call.1']
    #allocation6 [shape = 's32[1]{0}', space=sflag, size = 0x4, scoped, tag = 'scoped memory for tpu_custom_call.1']
    #allocation7 [shape = 'u8[16384]{0}', space=vmem, size = 0x4000, scoped, tag = 'input window, operand 1, single buffered']
    #allocation8 [shape = 's32[1]{0}', space=sflag, size = 0x4, scoped, tag = 'scoped memory for tpu_custom_call.1']
    #allocation9 [shape = 'u8[16384]{0}', space=vmem, size = 0x4000, scoped, tag = 'input window, operand 2, single buffered']
    #allocation10 [shape = 'u8[8192]{0}', space=vmem, size = 0x2000, scoped, tag = 'output window, operand 0, single buffered']
    %10 = vsyncpa [#allocation5], 0
    %11 = vsyncpa [#allocation8], 0
    %12 = vsyncpa [#allocation6], 0
    // Predicated region
    $region2: #{tpu_custom_call.1} parent=1 // pred_check
      _
    $region3: #{tpu_custom_call.1} parent=1 // pred_check_branch
      %14 = sbr.rel (0) target = $region5
    $region4: #{tpu_custom_call.1} parent=1 // pred_region
      %s16 = ssub.s32 256, 256
      %17 = vsyncadd [#allocation5], %s16
      %s18 = sshll.u32 [#allocation4], 4
      %s19 = int_to_ptr.vmem [resolvable:$true] %s18
      %24 = dma.hbm_to_vmem [thread:$0]  %s0, 256, %s19, [#allocation5], 128, 128, 8
    $region5: #{tpu_custom_call.1} parent=1 // pred_fallthru
      _
    // Predicated region
    $region6: #{tpu_custom_call.1} parent=1 // pred_check
      _
    $region7: #{tpu_custom_call.1} parent=1 // pred_check_branch
      %26 = sbr.rel (0) target = $region9
    $region8: #{tpu_custom_call.1} parent=1 // pred_region
      %s28 = ssub.s32 512, 512
      %29 = vsyncadd [#allocation8], %s28
      %s30 = sshll.u32 [#allocation7], 4
      %s31 = int_to_ptr.vmem [resolvable:$true] %s30
      %36 = dma.hbm_to_vmem [thread:$0]  %s1, 512, %s31, [#allocation8], 256, 128, 8
    $region9: #{tpu_custom_call.1} parent=1 // pred_fallthru
      _
    // Predicated region
    $region10: #{tpu_custom_call.1} parent=1 // pred_check
      _
    $region11: #{tpu_custom_call.1} parent=1 // pred_check_branch
      %38 = sbr.rel (0) target = $region13
    $region12: #{tpu_custom_call.1} parent=1 // pred_region
      %s39 = sadd.s32 0, 1
      %s41 = ssub.s32 512, 512
      %42 = vsyncadd [#allocation8], %s41
      %s43 = smul.addr %s39, 128
      %s44 = scalar_lea.hbm %s2, %s43
      %s45 = sshll.u32 [#allocation9], 4
      %s46 = int_to_ptr.vmem [resolvable:$true] %s45
      %51 = dma.hbm_to_vmem [thread:$0]  %s44, 512, %s46, [#allocation8], 256, 128, 8
    $region13: #{tpu_custom_call.1} parent=1 // pred_fallthru
      _
    // Predicated region
    $region14: #{tpu_custom_call.1} parent=1 // pred_check
      _
    $region15: #{tpu_custom_call.1} parent=1 // pred_check_branch
      %53 = sbr.rel (0) target = $region17
    $region16: #{tpu_custom_call.1} parent=1 // pred_region
      _
    $region17: #{tpu_custom_call.1} parent=1 // pred_fallthru
      _
    // Predicated region
    $region18: #{tpu_custom_call.1} parent=1 // pred_check
      _
    $region19: #{tpu_custom_call.1} parent=1 // pred_check_branch
      %55 = sbr.rel (0) target = $region21
    $region20: #{tpu_custom_call.1} parent=1 // pred_region
      %s56 = sadd.s32 0, 1
      %p57 = scmp.lt.s32.totalorder %s56, 1
      %s58 = scalar_select %p57, %s56, 1
      %s59 = scalar_lea.vmem %s4, %s58
      %s60 = sadd.s32 0, 1
    $region21: #{tpu_custom_call.1} parent=1 // pred_fallthru
      _
    // Predicated region
    $region22: #{tpu_custom_call.1} parent=1 // pred_check
      _
    $region23: #{tpu_custom_call.1} parent=1 // pred_check_branch
      %62 = sbr.rel (0) target = $region25
    $region24: #{tpu_custom_call.1} parent=1 // pred_region
      %63 = dma.done [#allocation5], 256
    $region25: #{tpu_custom_call.1} parent=1 // pred_fallthru
      _
    // Predicated region
    $region26: #{tpu_custom_call.1} parent=1 // pred_check
      _
    $region27: #{tpu_custom_call.1} parent=1 // pred_check_branch
      %65 = sbr.rel (0) target = $region29
    $region28: #{tpu_custom_call.1} parent=1 // pred_region
      %66 = dma.done [#allocation8], 512
    $region29: #{tpu_custom_call.1} parent=1 // pred_fallthru
      _
    // Predicated region
    $region30: #{tpu_custom_call.1} parent=1 // pred_check
      _
    $region31: #{tpu_custom_call.1} parent=1 // pred_check_branch
      %68 = sbr.rel (0) target = $region33
    $region32: #{tpu_custom_call.1} parent=1 // pred_region
      %69 = dma.done [#allocation8], 512
    $region33: #{tpu_custom_call.1} parent=1 // pred_fallthru
      _
    %s70 = sadd.s32 0, 1
    %p71 = scmp.lt.s32.totalorder %s70, 1
    %s72 = scalar_select %p71, %s70, 1
    %s73 = scalar_lea.vmem %s4, %s72
    %s74 = sadd.s32 0, 1
    %s75 = sadd.s32 0, 1
    %p76 = scmp.lt.s32.totalorder %s75, 1
    %s77 = scalar_select %p76, %s75, 1
    %s78 = scalar_lea.vmem %s4, %s77
    %s79 = sadd.s32 0, 1
    %p81 = scmp.eq.s32.totalorder 0, 0
    // Predicated region
    $region34: #{tpu_custom_call.1} parent=1 // pred_check
      %p82 = pneg %p81
    $region35: #{tpu_custom_call.1} parent=1 // pred_check_branch
      %84 = sbr.rel (%p82) target = $region37
    $region36: #{tpu_custom_call.1} parent=1 // pred_region
      %v85 = vld [vmem:[%s3] sm:$0x1]
      %v87 = vlaneseq
      %v88 = vshrl.u32 %v87, 7
      %v89 = vsub.s32 0, %v88
      %v90 = vrot.slane %v85, %v89
      %92 = vst [vmem:[#allocation2] sm:$0xff] %v90
      %93 = vst [vmem:[#allocation2 + $0x8] sm:$0xff] %v90
      %v94 = vld [vmem:[%s78] sm:$0x1]
      %v96 = vlaneseq
      %v97 = vshrl.u32 %v96, 7
      %v98 = vsub.s32 0, %v97
      %v99 = vrot.slane %v94, %v98
      %101 = vst [vmem:[#allocation3] sm:$0xff] %v99
      %102 = vst [vmem:[#allocation3 + $0x8] sm:$0xff] %v99
    $region37: #{tpu_custom_call.1} parent=1 // pred_fallthru
      _
    %v103 = vld [vmem:[#allocation4] sm:$0xff]
    %v104 = vld [vmem:[#allocation4 + $0x8] sm:$0xff]
    %v105 = vld [vmem:[#allocation7] sm:$0xff]
    %v106 = vld [vmem:[#allocation7 + $0x8] sm:$0xff]
    %v107 = vld [vmem:[#allocation7 + $0x10] sm:$0xff]
    %v108 = vld [vmem:[#allocation7 + $0x18] sm:$0xff]
    %v109 = vld [vmem:[#allocation9] sm:$0xff]
    %v110 = vld [vmem:[#allocation9 + $0x8] sm:$0xff]
    %v111 = vld [vmem:[#allocation9 + $0x10] sm:$0xff]
    %v112 = vld [vmem:[#allocation9 + $0x18] sm:$0xff]
    %v113 = vpack.c.bf16 %v104, %v103
    %v114 = vpack.c.bf16 %v106, %v105
    %v115 = vpack.c.bf16 %v108, %v107
    %v116 = vpack.c.bf16 %v110, %v109
    %v117 = vpack.c.bf16 %v112, %v111
    %v118 = vld [vmem:[#allocation2] sm:$0xff]
    %v119 = vld [vmem:[#allocation2 + $0x8] sm:$0xff]
    %vm120 = vcmask 261120
    %v122 = vsel %vm120, %v113, 0
    %124 = vmatprep.subr.bf16.mxu0 0
    %125 = vmatpush1.bf16.msra.mxu0 %v114
    %126 = vmatprep.subr.bf16.mxu0 0
    %127 = vmatpush1.bf16.msra.mxu0 %v115
    %128 = vmatprep.subr.bf16.mxu0 0
    %129 = vmatpush1.bf16.msra.mxu0 0
    %130 = vmatprep.subr.bf16.mxu0 0
    %131 = vmatpush1.bf16.msra.mxu0 0
    %132 = vmatprep.subr.bf16.mxu0 0
    %133 = vmatpush1.bf16.msra.mxu0 0
    %134 = vmatprep.subr.bf16.mxu0 0
    %135 = vmatpush1.bf16.msra.mxu0 0
    %136 = vmatprep.subr.bf16.mxu0 0
    %137 = vmatpush1.bf16.msra.mxu0 0
    %138 = vmatprep.subr.bf16.mxu0 0
    %139 = vmatpush1.bf16.msra.mxu0 0
    %140 = vmatprep.subr.bf16.mxu0 0
    %141 = vmatpush1.bf16.msra.mxu0 0
    %142 = vmatprep.subr.bf16.mxu0 0
    %143 = vmatpush1.bf16.msra.mxu0 0
    %144 = vmatprep.subr.bf16.mxu0 0
    %145 = vmatpush1.bf16.msra.mxu0 0
    %146 = vmatprep.subr.bf16.mxu0 0
    %147 = vmatpush1.bf16.msra.mxu0 0
    %148 = vmatprep.subr.bf16.mxu0 0
    %149 = vmatpush1.bf16.msra.mxu0 0
    %150 = vmatprep.subr.bf16.mxu0 0
    %151 = vmatpush1.bf16.msra.mxu0 0
    %152 = vmatprep.subr.bf16.mxu0 0
    %153 = vmatpush1.bf16.msra.mxu0 0
    %154 = vmatprep.subr.bf16.mxu0 0
    %155 = vmatpush1.bf16.msra.mxu0 0
    %156 = vmatprep.mubr.bf16.mxu0 0
    %157 = vmatmul.mubr.bf16.gmra.mrb[0].mxu0 %v122
    %v158 = vpop.f32.mrb[0].mxu0
    %v159 = vadd.f32 0.0, %v158
    %v160 = vpop.f32.mrb[0].mxu0
    %v161 = vpop.f32.mrb[0].mxu0
    %v162 = vadd.f32 0.0, %v161
    %v163 = vpop.f32.mrb[0].mxu0
    %164 = vdwg.mxu0
    %v165 = vadd.f32 %v118, %v159
    %v166 = vadd.f32 %v119, %v162
    %167 = vst [vmem:[#allocation2] sm:$0xff] %v165
    %168 = vst [vmem:[#allocation2 + $0x8] sm:$0xff] %v166
    %v169 = vld [vmem:[#allocation3] sm:$0xff]
    %v170 = vld [vmem:[#allocation3 + $0x8] sm:$0xff]
    %171 = vmatprep.subr.bf16.mxu0 0
    %172 = vmatpush1.bf16.msra.mxu0 %v116
    %173 = vmatprep.subr.bf16.mxu0 0
    %174 = vmatpush1.bf16.msra.mxu0 %v117
    %175 = vmatprep.subr.bf16.mxu0 0
    %176 = vmatpush1.bf16.msra.mxu0 0
    %177 = vmatprep.subr.bf16.mxu0 0
    %178 = vmatpush1.bf16.msra.mxu0 0
    %179 = vmatprep.subr.bf16.mxu0 0
    %180 = vmatpush1.bf16.msra.mxu0 0
    %181 = vmatprep.subr.bf16.mxu0 0
    %182 = vmatpush1.bf16.msra.mxu0 0
    %183 = vmatprep.subr.bf16.mxu0 0
    %184 = vmatpush1.bf16.msra.mxu0 0
    %185 = vmatprep.subr.bf16.mxu0 0
    %186 = vmatpush1.bf16.msra.mxu0 0
    %187 = vmatprep.subr.bf16.mxu0 0
    %188 = vmatpush1.bf16.msra.mxu0 0
    %189 = vmatprep.subr.bf16.mxu0 0
    %190 = vmatpush1.bf16.msra.mxu0 0
    %191 = vmatprep.subr.bf16.mxu0 0
    %192 = vmatpush1.bf16.msra.mxu0 0
    %193 = vmatprep.subr.bf16.mxu0 0
    %194 = vmatpush1.bf16.msra.mxu0 0
    %195 = vmatprep.subr.bf16.mxu0 0
    %196 = vmatpush1.bf16.msra.mxu0 0
    %197 = vmatprep.subr.bf16.mxu0 0
    %198 = vmatpush1.bf16.msra.mxu0 0
    %199 = vmatprep.subr.bf16.mxu0 0
    %200 = vmatpush1.bf16.msra.mxu0 0
    %201 = vmatprep.subr.bf16.mxu0 0
    %202 = vmatpush1.bf16.msra.mxu0 0
    %203 = vmatprep.mubr.bf16.mxu0 0
    %204 = vmatmul.mubr.bf16.gmra.mrb[0].mxu0 %v122
    %v205 = vpop.f32.mrb[0].mxu0
    %v206 = vadd.f32 0.0, %v205
    %v207 = vpop.f32.mrb[0].mxu0
    %v208 = vpop.f32.mrb[0].mxu0
    %v209 = vadd.f32 0.0, %v208
    %v210 = vpop.f32.mrb[0].mxu0
    %211 = vdwg.mxu0
    %v212 = vadd.f32 %v169, %v206
    %v213 = vadd.f32 %v170, %v209
    %214 = vst [vmem:[#allocation3] sm:$0xff] %v212
    %215 = vst [vmem:[#allocation3 + $0x8] sm:$0xff] %v213
    // Predicated region
    $region38: #{tpu_custom_call.1} parent=1 // pred_check
      %p216 = pneg %p81
    $region39: #{tpu_custom_call.1} parent=1 // pred_check_branch
      %218 = sbr.rel (%p216) target = $region41
    $region40: #{tpu_custom_call.1} parent=1 // pred_region
      %v219 = vld [vmem:[#allocation2] sm:$0xff]
      %v220 = vld [vmem:[#allocation2 + $0x8] sm:$0xff]
      %v221 = vld [vmem:[#allocation3] sm:$0xff]
      %v222 = vld [vmem:[#allocation3 + $0x8] sm:$0xff]
      %v223 = vsub.f32 0.0, %v221
      %v224 = vsub.f32 0.0, %v222
      %v225 = vmul.f32 %v223, 1.442695
      %v226 = vpow.pop %v225
      %v227 = vmul.f32 %v224, 1.442695
      %v228 = vpow.pop %v227
      %v229 = vadd.f32 %v226, 1.0
      %v230 = vadd.f32 %v228, 1.0
      %v231 = vrcp.pop %v229
      %v232 = vrcp.pop %v230
      %v233 = vmul.f32 %v219, %v231
      %v234 = vmul.f32 %v220, %v232
      %235 = vst [vmem:[#allocation10] sm:$0xff] %v233
      %236 = vst [vmem:[#allocation10 + $0x8] sm:$0xff] %v234
    $region41: #{tpu_custom_call.1} parent=1 // pred_fallthru
      _
    // Predicated region
    $region42: #{tpu_custom_call.1} parent=1 // pred_check
      _
    $region43: #{tpu_custom_call.1} parent=1 // pred_check_branch
      %238 = sbr.rel (0) target = $region45
    $region44: #{tpu_custom_call.1} parent=1 // pred_region
      %s240 = ssub.s32 256, 256
      %241 = vsyncadd [#allocation6], %s240
      %s242 = sshll.u32 [#allocation10], 4
      %s243 = int_to_ptr.vmem [resolvable:$true] %s242
      %248 = dma.vmem_to_hbm [thread:$0]  %s243, 256, %s5, [#allocation6], 128, 128, 8
    $region45: #{tpu_custom_call.1} parent=1 // pred_fallthru
      _
    // Predicated region
    $region46: #{tpu_custom_call.1} parent=1 // pred_check
      _
    $region47: #{tpu_custom_call.1} parent=1 // pred_check_branch
      %250 = sbr.rel (0) target = $region49
    $region48: #{tpu_custom_call.1} parent=1 // pred_region
      %251 = dma.done [#allocation6], 256
    $region49: #{tpu_custom_call.1} parent=1 // pred_fallthru
      _
    %252 = vsyncpa [#allocation5], 1
    %253 = vsyncpa [#allocation8], 1
    %254 = vsyncpa [#allocation6], 1

</llo_original>
